<compile_context>
chip_gen: v6e
topology: v6e:2x2x1
jax: 0.10.0
libtpu: 0.0.40
codegen_flags: <defaults>
</compile_context>

<pallas_src>
import functools

import jax
import jax.numpy as jnp
from jax.experimental import pallas as pl
from jax.experimental.pallas import tpu as pltpu


def _round_up(x: int, m: int) -> int:
    return (x + m - 1) // m * m


def _make_focal_loss_kernel(gamma: float, n_true: int, tile_n: int, alpha_is_ones: bool):
    gamma = float(gamma)

    def kernel(logits_ref, targets_ref, alpha_ref, out_ref):
        x = logits_ref[...].astype(jnp.float32)          # (TN, C)
        TN, C = x.shape

        # targets arrive lane-major (1, TN); form the (TN, 1) column in-kernel
        # (one small int32 lane->sublane relayout).
        t_col = jnp.transpose(targets_ref[...], (1, 0))  # (TN, 1) int32

        # one-hot class mask (bool) via 2-D iota == target  (== scatter_(1, ids, 1))
        col = jax.lax.broadcasted_iota(jnp.int32, (TN, C), 1)
        mask = col == t_col                              # (TN, C) bool

        # log-sum-exp: log_p = x_t - m - log(sum exp(x - m)); probs = exp(log_p)
        m = jnp.max(x, axis=1, keepdims=True)                           # (TN, 1)
        s = jnp.sum(jnp.exp(x - m), axis=1, keepdims=True)              # (TN, 1)
        x_t = jnp.sum(jnp.where(mask, x, 0.0), axis=1, keepdims=True)   # (TN, 1)
        log_p = (x_t - m) - jnp.log(s)                                  # (TN, 1)
        probs = jnp.exp(log_p)                                          # (TN, 1)

        om = 1.0 - probs
        if gamma == 0.0:
            pw = jnp.ones_like(om)
        elif gamma == 1.0:
            pw = om
        elif gamma == 2.0:
            pw = om * om
        elif gamma == float(int(gamma)) and 0.0 < gamma <= 8.0:
            pw = om
            for _ in range(int(gamma) - 1):
                pw = pw * om
        else:
            pw = jnp.exp(gamma * jnp.log1p(-probs))

        if alpha_is_ones:
            loss = -(pw * log_p)                                        # (TN, 1)
        else:
            # Gather alpha[target] on the (otherwise idle) MXU instead of an
            # extra XLU cross-lane reduction.
            a_col = alpha_ref[...].astype(jnp.float32)                  # (C, 1)
            alpha_t = jnp.dot(mask.astype(jnp.float32), a_col,
                              preferred_element_type=jnp.float32)       # (TN, 1)
            loss = -(alpha_t * pw * log_p)

        # Ragged last block: mask rows beyond the true N (select, so garbage /
        # NaN in the undefined tail cannot leak into the sum).
        if n_true % tile_n != 0:
            row = (jax.lax.broadcasted_iota(jnp.int32, (TN, 1), 0)
                   + pl.program_id(0) * tile_n)
            loss = jnp.where(row < n_true, loss, 0.0)

        block_sum = jnp.sum(loss)                                       # scalar f32
        out_ref[...] = jnp.broadcast_to(block_sum, out_ref.shape)

    return kernel


def _choose_tile_n(n: int, c: int, requested=None) -> int:
    """Row-tile size: multiple of 128 (lane-major targets blocking), sized to
    keep the double-buffered, lane-padded logits tile ~10 MiB in VMEM."""
    if requested is not None:
        tn = max(128, _round_up(int(requested), 128))
    else:
        c_lanes = _round_up(c, 128)               # VMEM lane padding of the C axis
        budget_bytes = 10 * 1024 * 1024           # double-buffered logits budget
        tn = budget_bytes // (2 * c_lanes * 4)
        tn = max(128, min(8192, (tn // 128) * 128))
    return min(tn, _round_up(max(n, 1), 128))


@functools.partial(jax.jit, static_argnames=("gamma", "size_average", "tile_n"))
def focal_loss(inputs, targets, alpha=None, gamma=2.0, size_average=True, tile_n=None):
    """inputs: (N, C) float, targets: (N,) int. Returns scalar f32 loss."""
    N, C = inputs.shape

    alpha_is_ones = alpha is None
    if alpha_is_ones:
        alpha_col = jnp.ones((C, 1), dtype=jnp.float32)   # matches torch.ones(class_num, 1)
    else:
        alpha_col = jnp.asarray(alpha, dtype=jnp.float32).reshape(C, 1)

    tn = _choose_tile_n(N, C, tile_n)
    num_blocks = pl.cdiv(N, tn)

    targets_row = targets.astype(jnp.int32).reshape(1, N)   # lane-major targets

    kernel = _make_focal_loss_kernel(float(gamma), int(N), int(tn), alpha_is_ones)

    partials = pl.pallas_call(
        kernel,
        out_shape=jax.ShapeDtypeStruct((num_blocks, 8, 128), jnp.float32),
        grid_spec=pltpu.PrefetchScalarGridSpec(
            num_scalar_prefetch=0,
            grid=(num_blocks,),
            in_specs=[
                pl.BlockSpec((tn, C), lambda i: (i, 0)),    # logits tile (full C, no pad)
                pl.BlockSpec((1, tn), lambda i: (0, i)),    # targets, lane-major
                pl.BlockSpec((C, 1), lambda i: (0, 0)),     # alpha column (resident)
            ],
            out_specs=pl.BlockSpec((1, 8, 128), lambda i: (i, 0, 0)),  # per-block partial
        ),
        compiler_params=pltpu.CompilerParams(
            dimension_semantics=("parallel",),              # megacore-shardable (v7x)
            vmem_limit_bytes=32 * 1024 * 1024,
        ),
    )(inputs, targets_row, alpha_col)

    total = jnp.sum(partials[:, 0, 0])
    if size_average:
        total = total / jnp.float32(N)
    return total


class FocalLoss:
    """Thin wrapper mirroring the PyTorch module's interface."""

    def __init__(self, class_num, alpha=None, gamma=2.0, size_average=True):
        self._alpha_is_default = alpha is None
        if alpha is None:
            self.alpha = jnp.ones((class_num, 1), dtype=jnp.float32)
        else:
            self.alpha = jnp.asarray(alpha, dtype=jnp.float32)
        self.gamma = gamma
        self.class_num = class_num
        self.size_average = size_average

    def __call__(self, inputs, targets):
        alpha = None if self._alpha_is_default else self.alpha
        return focal_loss(inputs, targets, alpha=alpha,
                          gamma=self.gamma, size_average=self.size_average)


def focal_loss_ref(inputs, targets, alpha=None, gamma=2.0, size_average=True):
    """Pure-JAX reference mirroring the PyTorch module."""
    N, C = inputs.shape
    if alpha is None:
        alpha = jnp.ones((C, 1), dtype=jnp.float32)
    P = jax.nn.softmax(inputs.astype(jnp.float32), axis=1)
    mask = jax.nn.one_hot(targets, C, dtype=jnp.float32)
    probs = jnp.sum(P * mask, axis=1, keepdims=True)
    alpha_row = jnp.asarray(alpha, jnp.float32).reshape(-1)[targets].reshape(-1, 1)
    log_p = jnp.log(probs)
    batch_loss = -alpha_row * (1.0 - probs) ** gamma * log_p
    return batch_loss.mean() if size_average else batch_loss.sum()


if __name__ == "__main__":
    key = jax.random.PRNGKey(0)
    k1, k2, k3 = jax.random.split(key, 3)

    # SSD-style focal loss: N anchors x 21 classes. tile_n=256 -> 4-block grid
    # with a ragged last block (1000 rows); exercises the parallel partial sums.
    N, C = 1000, 21
    logits = jax.random.normal(k1, (N, C), dtype=jnp.float32)
    targets = jax.random.randint(k2, (N,), 0, C, dtype=jnp.int32)

    # 1) default (all-ones) alpha path, mean reduction, multi-block grid
    loss = jax.block_until_ready(
        focal_loss(logits, targets, gamma=2.0, size_average=True, tile_n=256))
    ref = jax.block_until_ready(
        focal_loss_ref(logits, targets, gamma=2.0, size_average=True))
    assert jnp.allclose(loss, ref, rtol=1e-4, atol=1e-6), (loss, ref)

    # 2) explicit per-class alpha (MXU gather path), sum reduction, single ragged block
    alpha = jax.random.uniform(k3, (C,), minval=0.25, maxval=1.0, dtype=jnp.float32)
    loss2 = jax.block_until_ready(
        focal_loss(logits, targets, alpha=alpha, gamma=2.0, size_average=False))
    ref2 = jax.block_until_ready(
        focal_loss_ref(logits, targets, alpha=alpha, gamma=2.0, size_average=False))
    assert jnp.allclose(loss2, ref2, rtol=1e-4, atol=1e-3), (loss2, ref2)

    print("KERNEL_OK")
</pallas_src>

<mosaic_0001>
module attributes {stable_mosaic.version = 11 : i64} {
  func.func @kernel(%arg0: i32, %arg1: memref<256x21xf32, #tpu.memory_space<vmem>>, %arg2: memref<1x256xi32, #tpu.memory_space<vmem>>, %arg3: memref<21x1xf32, #tpu.memory_space<vmem>>, %arg4: memref<1x8x128xf32, #tpu.memory_space<vmem>>) attributes {dimension_semantics = [#tpu.dimension_semantics<parallel>], iteration_bounds = array<i64: 4>, scalar_prefetch = 0 : i64, scratch_operands = 0 : i64, tpu.core_type = #tpu.core_type<tc>, window_params = [{transform_indices = @transform_0, window_bounds = array<i64: 256, 21>}, {transform_indices = @transform_1, window_bounds = array<i64: 1, 256>}, {pipeline_mode = #tpu.pipeline_mode<synchronous>, transform_indices = @transform_2, window_bounds = array<i64: 21, 1>}, {transform_indices = @transform_3, window_bounds = array<i64: 1, 8, 128>}]} {
    %c0 = arith.constant 0 : index
    %c0_0 = arith.constant 0 : index
    %0 = vector.load %arg1[%c0, %c0_0] : memref<256x21xf32, #tpu.memory_space<vmem>>, vector<256x21xf32>
    %c0_1 = arith.constant 0 : index
    %c0_2 = arith.constant 0 : index
    %1 = vector.load %arg2[%c0_1, %c0_2] : memref<1x256xi32, #tpu.memory_space<vmem>>, vector<1x256xi32>
    %2 = tpu.transpose %1, [1, 0] : vector<1x256xi32> -> vector<256x1xi32>
    %3 = tpu.iota {dimensions = array<i32: 1>} : vector<256x21xi32>
    %4 = vector.broadcast %2 : vector<256x1xi32> to vector<256x21xi32>
    %5 = arith.cmpi eq, %3, %4 : vector<256x21xi32>
    %cst = arith.constant dense<0xFF800000> : vector<256xf32>
    %6 = vector.multi_reduction <maximumf>, %0, %cst [1] : vector<256x21xf32> to vector<256xf32>
    %7 = vector.shape_cast %6 : vector<256xf32> to vector<256x1xf32>
    %8 = vector.broadcast %7 : vector<256x1xf32> to vector<256x21xf32>
    %9 = arith.subf %0, %8 : vector<256x21xf32>
    %10 = math.exp %9 : vector<256x21xf32>
    %cst_3 = arith.constant dense<0.000000e+00> : vector<256xf32>
    %11 = vector.multi_reduction <add>, %10, %cst_3 [1] : vector<256x21xf32> to vector<256xf32>
    %12 = vector.shape_cast %11 : vector<256xf32> to vector<256x1xf32>
    %cst_4 = arith.constant 0.000000e+00 : f32
    %13 = vector.broadcast %cst_4 : f32 to vector<256x21xf32>
    %14 = arith.select %5, %0, %13 : vector<256x21xi1>, vector<256x21xf32>
    %cst_5 = arith.constant dense<0.000000e+00> : vector<256xf32>
    %15 = vector.multi_reduction <add>, %14, %cst_5 [1] : vector<256x21xf32> to vector<256xf32>
    %16 = vector.shape_cast %15 : vector<256xf32> to vector<256x1xf32>
    %17 = arith.subf %16, %7 : vector<256x1xf32>
    %18 = math.log %12 : vector<256x1xf32>
    %19 = arith.subf %17, %18 : vector<256x1xf32>
    %20 = math.exp %19 : vector<256x1xf32>
    %cst_6 = arith.constant 1.000000e+00 : f32
    %21 = vector.broadcast %cst_6 : f32 to vector<256x1xf32>
    %22 = arith.subf %21, %20 : vector<256x1xf32>
    %23 = arith.mulf %22, %22 : vector<256x1xf32>
    %24 = arith.mulf %23, %19 : vector<256x1xf32>
    %cst_7 = arith.constant 0.000000e+00 : f32
    %25 = vector.broadcast %cst_7 : f32 to vector<256x1xf32>
    %26 = arith.subf %25, %24 : vector<256x1xf32>
    %27 = tpu.iota {dimensions = array<i32: 0>} : vector<256x1xi32>
    %c256_i32 = arith.constant 256 : i32
    %28 = arith.muli %arg0, %c256_i32 : i32
    %29 = vector.broadcast %28 : i32 to vector<256x1xi32>
    %30 = arith.addi %27, %29 : vector<256x1xi32>
    %c1000_i32 = arith.constant 1000 : i32
    %31 = vector.broadcast %c1000_i32 : i32 to vector<256x1xi32>
    %32 = arith.cmpi slt, %30, %31 : vector<256x1xi32>
    %cst_8 = arith.constant 0.000000e+00 : f32
    %33 = vector.broadcast %cst_8 : f32 to vector<256x1xf32>
    %34 = arith.select %32, %26, %33 : vector<256x1xi1>, vector<256x1xf32>
    %35 = vector.shape_cast %34 : vector<256x1xf32> to vector<1x256x1xf32>
    %cst_9 = arith.constant dense<0.000000e+00> : vector<1xf32>
    %36 = vector.multi_reduction <add>, %35, %cst_9 [1, 2] : vector<1x256x1xf32> to vector<1xf32>
    %37 = vector.shape_cast %36 : vector<1xf32> to vector<1x1x1xf32>
    %38 = vector.extract %37[0, 0, 0] : f32 from vector<1x1x1xf32>
    %39 = vector.broadcast %38 : f32 to vector<1x8x128xf32>
    %c0_10 = arith.constant 0 : index
    %c0_11 = arith.constant 0 : index
    %c0_12 = arith.constant 0 : index
    %40 = vector.load %arg4[%c0_10, %c0_11, %c0_12] : memref<1x8x128xf32, #tpu.memory_space<vmem>>, vector<1x8x128xf32>
    tpu.vector_store %arg4[%c0_10, %c0_11, %c0_12], %39 {strides = array<i32>} : memref<1x8x128xf32, #tpu.memory_space<vmem>>, vector<1x8x128xf32>,
    return
  }
  func.func @transform_0(%arg0: i32) -> (i32, i32) {
    %c0_i32 = arith.constant 0 : i32
    %c0_i32_0 = arith.constant 0 : i32
    return %arg0, %c0_i32 : i32, i32
  }
  func.func @transform_1(%arg0: i32) -> (i32, i32) {
    %c0_i32 = arith.constant 0 : i32
    %c0_i32_0 = arith.constant 0 : i32
    return %c0_i32, %arg0 : i32, i32
  }
  func.func @transform_2(%arg0: i32) -> (i32, i32) {
    %c0_i32 = arith.constant 0 : i32
    %c0_i32_0 = arith.constant 0 : i32
    %c0_i32_1 = arith.constant 0 : i32
    return %c0_i32, %c0_i32_0 : i32, i32
  }
  func.func @transform_3(%arg0: i32) -> (i32, i32, i32) {
    %c0_i32 = arith.constant 0 : i32
    %c0_i32_0 = arith.constant 0 : i32
    %c0_i32_1 = arith.constant 0 : i32
    return %arg0, %c0_i32, %c0_i32_0 : i32, i32, i32
  }
}

</mosaic_0001>

<llo_original>
// kernel: focal_loss.1
$region0: #{focal_loss.1}
  #allocation0 [shape = 'u32[]', space=smem, size = 0x4, offset = 0x4, fixed_abs, tag = 'smem constant byte address 0x4 - core index']
  #allocation1 [shape = 'u32[144,128]{1,0:T(1,128)}', space=vmem, size = 0x12000, scoped, tag = 'internal scratch']
  %s0 = inlined_call_operand.vmem [shape: f32[1000,21], index: 0, kind: input, shape index: {}]
  %s1 = inlined_call_operand.vmem [shape: s32[1,1000], index: 1, kind: input, shape index: {}]
  %s2 = inlined_call_operand.vmem [shape: f32[21,1], index: 2, kind: input, shape index: {}]
  %s3 = inlined_call_operand.vmem [shape: f32[4,8,128], index: 3, kind: output, shape index: {}]
  %s4 = sld [smem:[#allocation0]]
  $region45: #{focal_loss.1} parent=0
    _
  %s6 = ssub.s32 1, %s4
  %s7 = scalar_select 0, %s6, %s4
  loop: start=0, step=1, limit=6
  $region2: #{focal_loss.1} parent=0 // loop_pre_header
    _
  $region3: #{focal_loss.1} parent=0 // loop_header
    %s9 = sphi 0, %s13
    %p10 = scmp.ge.s32.totalorder %s9, 6
    %s19 = sphi 0, %s21
    %s22 = sphi 0, %s19
    %s23 = sphi 0, %s22
    %s39 = sphi 0, %s23
    %s45 = sphi 0, %s47
    %s48 = sphi 0, %s45
    %s49 = sphi 0, %s48
    %s65 = sphi 0, %s49
    %s69 = sphi 0, %s69
    %s71 = sphi 0, %s69
    %s72 = sphi 0, %s71
    %s86 = sphi 0, %s72
    %s92 = sphi 0, %s94
    %s95 = sphi 0, %s92
    %s96 = sphi 0, %s95
    %s112 = sphi 0, %s96
  $region4: #{focal_loss.1} parent=0 // loop_header_branch
    %12 = sbr.rel (%p10) target = $region8
  $region5: #{focal_loss.1} parent=0 // loop_body
    %s14 = ssub.s32 %s9, 1
    %s15 = ssub.s32 %s9, 2
    %s16 = sadd.s32 %s9, 1
    %s17 = ssub.s32 %s9, %s16
    %p18 = scmp.eq.s32.totalorder %s17, 0
    %s20 = sadd.s32 %s19, 1
    %s21 = scalar_select %p18, %s19, %s20
    %p24 = pneg %p18
    %p25 = scmp.eq.s32.totalorder %s9, 3
    %p26 = por %p24, %p25
    %p27 = scmp.ne.s32.totalorder %s19, %s22
    %p28 = scmp.eq.s32.totalorder %s9, 0
    %p29 = por %p27, %p28
    %p30 = scmp.ne.s32.totalorder %s19, %s22
    %p31 = scmp.eq.s32.totalorder %s14, 3
    %p32 = por %p30, %p31
    %p33 = scmp.ne.s32.totalorder %s22, %s23
    %p34 = scmp.eq.s32.totalorder %s14, 0
    %p35 = por %p33, %p34
    %p36 = scmp.ne.s32.totalorder %s22, %s23
    %p37 = scmp.eq.s32.totalorder %s15, 3
    %p38 = por %p36, %p37
    %p40 = scmp.ne.s32.totalorder %s23, %s39
    %p41 = scmp.eq.s32.totalorder %s15, 0
    %p42 = por %p40, %p41
    %s43 = ssub.s32 %s9, %s16
    %p44 = scmp.eq.s32.totalorder %s43, 0
    %s46 = sadd.s32 %s45, 1
    %s47 = scalar_select %p44, %s45, %s46
    %p50 = pneg %p44
    %p51 = scmp.eq.s32.totalorder %s9, 3
    %p52 = por %p50, %p51
    %p53 = scmp.ne.s32.totalorder %s45, %s48
    %p54 = scmp.eq.s32.totalorder %s9, 0
    %p55 = por %p53, %p54
    %p56 = scmp.ne.s32.totalorder %s45, %s48
    %p57 = scmp.eq.s32.totalorder %s14, 3
    %p58 = por %p56, %p57
    %p59 = scmp.ne.s32.totalorder %s48, %s49
    %p60 = scmp.eq.s32.totalorder %s14, 0
    %p61 = por %p59, %p60
    %p62 = scmp.ne.s32.totalorder %s48, %s49
    %p63 = scmp.eq.s32.totalorder %s15, 3
    %p64 = por %p62, %p63
    %p66 = scmp.ne.s32.totalorder %s49, %s65
    %p67 = scmp.eq.s32.totalorder %s15, 0
    %p68 = por %p66, %p67
    %s70 = sadd.s32 %s69, 1
    %p73 = scmp.eq.s32.totalorder %s9, 3
    %p74 = scmp.ne.s32.totalorder %s69, %s71
    %p75 = scmp.eq.s32.totalorder %s9, 0
    %p76 = por %p74, %p75
    %p77 = scmp.ne.s32.totalorder %s69, %s71
    %p78 = scmp.eq.s32.totalorder %s14, 3
    %p79 = por %p77, %p78
    %p80 = scmp.ne.s32.totalorder %s71, %s72
    %p81 = scmp.eq.s32.totalorder %s14, 0
    %p82 = por %p80, %p81
    %p83 = scmp.ne.s32.totalorder %s71, %s72
    %p84 = scmp.eq.s32.totalorder %s15, 3
    %p85 = por %p83, %p84
    %p87 = scmp.ne.s32.totalorder %s72, %s86
    %p88 = scmp.eq.s32.totalorder %s15, 0
    %p89 = por %p87, %p88
    %s90 = ssub.s32 %s9, %s16
    %p91 = scmp.eq.s32.totalorder %s90, 0
    %s93 = sadd.s32 %s92, 1
    %s94 = scalar_select %p91, %s92, %s93
    %p97 = pneg %p91
    %p98 = scmp.eq.s32.totalorder %s9, 3
    %p99 = por %p97, %p98
    %p100 = scmp.ne.s32.totalorder %s92, %s95
    %p101 = scmp.eq.s32.totalorder %s9, 0
    %p102 = por %p100, %p101
    %p103 = scmp.ne.s32.totalorder %s92, %s95
    %p104 = scmp.eq.s32.totalorder %s14, 3
    %p105 = por %p103, %p104
    %p106 = scmp.ne.s32.totalorder %s95, %s96
    %p107 = scmp.eq.s32.totalorder %s14, 0
    %p108 = por %p106, %p107
    %p109 = scmp.ne.s32.totalorder %s95, %s96
    %p110 = scmp.eq.s32.totalorder %s15, 3
    %p111 = por %p109, %p110
    %p113 = scmp.ne.s32.totalorder %s96, %s112
    %p114 = scmp.eq.s32.totalorder %s15, 0
    %p115 = por %p113, %p114
    %p116 = scmp.le.s32.totalorder 1, %s9
    %p117 = scmp.lt.s32.totalorder %s9, 5
    %p118 = pnand %p116, %p117
    %p119 = pneg %p118
    // Predicated region
    $region9: #{focal_loss.1} parent=5 // pred_check
      _
    $region10: #{focal_loss.1} parent=5 // pred_check_branch
      %121 = sbr.rel (%p118) target = $region12
    $region11: #{focal_loss.1} parent=5 // pred_region
      %s122 = ssub.s32 %s9, 1
      // Predicated region
      $region13: #{focal_loss.1} parent=11 // pred_check
        %p123 = pneg %p82
      $region14: #{focal_loss.1} parent=11 // pred_check_branch
        %125 = sbr.rel (%p123) target = $region16
      $region15: #{focal_loss.1} parent=11 // pred_region
        _
      $region16: #{focal_loss.1} parent=11 // pred_fallthru
        _
    $region12: #{focal_loss.1} parent=5 // pred_fallthru
      _
    %p126 = scmp.lt.s32.totalorder %s9, 4
    // Predicated region
    $region17: #{focal_loss.1} parent=5 // pred_check
      %p127 = pneg %p126
    $region18: #{focal_loss.1} parent=5 // pred_check_branch
      %129 = sbr.rel (%p127) target = $region20
    $region19: #{focal_loss.1} parent=5 // pred_region
      // Predicated region
      $region21: #{focal_loss.1} parent=19 // pred_check
        %p130 = pneg %p29
      $region22: #{focal_loss.1} parent=19 // pred_check_branch
        %132 = sbr.rel (%p130) target = $region24
      $region23: #{focal_loss.1} parent=19 // pred_region
        %s133 = smul.u32 32, %s9
        %s134 = ssub.s32 125, %s133
        %p135 = scmp.lt.s32.totalorder %s134, 32
        %s136 = scalar_select %p135, %s134, 32
        %s137 = smul.u32 128, %s136
        %p138 = scmp.lt.s32.totalorder %s133, 124
        %s139 = scalar_select %p138, %s133, 124
        %s140 = smul.addr %s139, 8
        %s141 = scalar_lea.vmem %s0, %s140
        %s142 = smul.u32 32, %s9
        %s143 = ssub.s32 125, %s142
        %p144 = scmp.lt.s32.totalorder %s143, 32
        %s145 = scalar_select %p144, %s143, 32
        %s146 = smul.u32 128, %s145
      $region24: #{focal_loss.1} parent=19 // pred_fallthru
        _
      // Predicated region
      $region25: #{focal_loss.1} parent=19 // pred_check
        %p147 = pneg %p55
      $region26: #{focal_loss.1} parent=19 // pred_check_branch
        %149 = sbr.rel (%p147) target = $region28
      $region27: #{focal_loss.1} parent=19 // pred_region
        %s150 = smul.u32 2, %s9
        %p151 = scmp.lt.s32.totalorder %s150, 7
        %s152 = scalar_select %p151, %s150, 7
        %s153 = scalar_lea.vmem %s1, %s152
        %s154 = smul.u32 2, %s9
      $region28: #{focal_loss.1} parent=19 // pred_fallthru
        _
    $region20: #{focal_loss.1} parent=5 // pred_fallthru
      _
    %p155 = scmp.le.s32.totalorder 1, %s9
    %p156 = scmp.lt.s32.totalorder %s9, 5
    %p157 = pnand %p155, %p156
    %p158 = pneg %p157
    // Predicated region
    $region29: #{focal_loss.1} parent=5 // pred_check
      _
    $region30: #{focal_loss.1} parent=5 // pred_check_branch
      %160 = sbr.rel (%p157) target = $region32
    $region31: #{focal_loss.1} parent=5 // pred_region
      %s161 = ssub.s32 %s9, 1
      %s162 = smul.u32 32, %s14
      %s163 = ssub.s32 125, %s162
      %p164 = scmp.lt.s32.totalorder %s163, 32
      %s165 = scalar_select %p164, %s163, 32
      %s166 = smul.u32 128, %s165
      %p167 = scmp.lt.s32.totalorder %s162, 124
      %s168 = scalar_select %p167, %s162, 124
      %s169 = smul.addr %s168, 8
      %s170 = scalar_lea.vmem %s0, %s169
      %p171 = pneg %p35
      %p172 = pneg %p32
      %s173 = smul.u32 2, %s14
      %p174 = scmp.lt.s32.totalorder %s173, 7
      %s175 = scalar_select %p174, %s173, 7
      %s176 = scalar_lea.vmem %s1, %s175
      %p177 = pneg %p61
      %p178 = pneg %p58
      %p179 = pneg %p82
      %p180 = pneg %p79
      %p181 = pneg %p108
      %p182 = pneg %p105
      %p183 = scmp.lt.s32.totalorder %s14, 3
      %s184 = scalar_select %p183, %s14, 3
      %s185 = smul.addr %s184, 8
      %s186 = scalar_lea.vmem %s3, %s185
      %s187 = smul.u32 32, %s14
      %s188 = ssub.s32 125, %s187
      %p189 = scmp.lt.s32.totalorder %s188, 32
      %s190 = scalar_select %p189, %s188, 32
      %s191 = smul.u32 128, %s190
      %p192 = scmp.lt.s32.totalorder %s187, 124
      %s193 = scalar_select %p192, %s187, 124
      %s194 = smul.addr %s193, 8
      %s195 = scalar_lea.vmem %s0, %s194
      %s196 = smul.u32 32, %s14
      %s197 = ssub.s32 125, %s196
      %p198 = scmp.lt.s32.totalorder %s197, 32
      %s199 = scalar_select %p198, %s197, 32
      %s200 = smul.u32 128, %s199
      %s201 = smul.u32 2, %s14
      %p202 = scmp.lt.s32.totalorder %s201, 7
      %s203 = scalar_select %p202, %s201, 7
      %s204 = scalar_lea.vmem %s1, %s203
      %s205 = smul.u32 2, %s14
      %p206 = scmp.lt.s32.totalorder %s14, 3
      %s207 = scalar_select %p206, %s14, 3
      %s208 = smul.addr %s207, 8
      %s209 = scalar_lea.vmem %s3, %s208
      %v210 = vld [vmem:[%s195] sm:$0xff]
      %v211 = vld [vmem:[%s195 + $0x8] sm:$0xff]
      %v212 = vld [vmem:[%s195 + $0x10] sm:$0xff]
      %v213 = vld [vmem:[%s195 + $0x18] sm:$0xff]
      %v214 = vld [vmem:[%s195 + $0x20] sm:$0xff]
      %v215 = vld [vmem:[%s195 + $0x28] sm:$0xff]
      %v216 = vld [vmem:[%s195 + $0x30] sm:$0xff]
      %v217 = vld [vmem:[%s195 + $0x38] sm:$0xff]
      %v218 = vld [vmem:[%s195 + $0x40] sm:$0xff]
      %v219 = vld [vmem:[%s195 + $0x48] sm:$0xff]
      %v220 = vld [vmem:[%s195 + $0x50] sm:$0xff]
      %v221 = vld [vmem:[%s195 + $0x58] sm:$0xff]
      %v222 = vld [vmem:[%s195 + $0x60] sm:$0xff]
      %v223 = vld [vmem:[%s195 + $0x68] sm:$0xff]
      %v224 = vld [vmem:[%s195 + $0x70] sm:$0xff]
      %v225 = vld [vmem:[%s195 + $0x78] sm:$0xff]
      %v226 = vld [vmem:[%s195 + $0x80] sm:$0xff]
      %v227 = vld [vmem:[%s195 + $0x88] sm:$0xff]
      %v228 = vld [vmem:[%s195 + $0x90] sm:$0xff]
      %v229 = vld [vmem:[%s195 + $0x98] sm:$0xff]
      %v230 = vld [vmem:[%s195 + $0xa0] sm:$0xff]
      %v231 = vld [vmem:[%s195 + $0xa8] sm:$0xff]
      %v232 = vld [vmem:[%s195 + $0xb0] sm:$0xff]
      %v233 = vld [vmem:[%s195 + $0xb8] sm:$0xff]
      %v234 = vld [vmem:[%s195 + $0xc0] sm:$0xff]
      %v235 = vld [vmem:[%s195 + $0xc8] sm:$0xff]
      %v236 = vld [vmem:[%s195 + $0xd0] sm:$0xff]
      %v237 = vld [vmem:[%s195 + $0xd8] sm:$0xff]
      %v238 = vld [vmem:[%s195 + $0xe0] sm:$0xff]
      %v239 = vld [vmem:[%s195 + $0xe8] sm:$0xff]
      %v240 = vld [vmem:[%s195 + $0xf0] sm:$0xff]
      %v241 = vld [vmem:[%s195 + $0xf8] sm:$0xff]
      %v242 = vld [vmem:[%s204] sm:$0x3]
      %v243 = vlaneseq
      %v244 = vshrl.u32 %v243, 7
      %v245 = vsub.s32 0, %v244
      %v246 = vrot.slane %v242, %v245
      %v247 = vlaneseq
      %v248 = vshrl.u32 %v247, 7
      %v249 = vsub.s32 1, %v248
      %v250 = vrot.slane %v242, %v249
      %251 = vxpose.xlu0.b32.start [1/16] %v246, 128
      %252 = vxpose.xlu0.b32.cont [2/16] 0, 128
      %253 = vxpose.xlu0.b32.cont [3/16] 0, 128
      %254 = vxpose.xlu0.b32.cont [4/16] 0, 128
      %255 = vxpose.xlu0.b32.cont [5/16] 0, 128
      %256 = vxpose.xlu0.b32.cont [6/16] 0, 128
      %257 = vxpose.xlu0.b32.cont [7/16] 0, 128
      %258 = vxpose.xlu0.b32.cont [8/16] 0, 128
      %259 = vxpose.xlu0.b32.cont [9/16] 0, 128
      %260 = vxpose.xlu0.b32.cont [10/16] 0, 128
      %261 = vxpose.xlu0.b32.cont [11/16] 0, 128
      %262 = vxpose.xlu0.b32.cont [12/16] 0, 128
      %263 = vxpose.xlu0.b32.cont [13/16] 0, 128
      %264 = vxpose.xlu0.b32.cont [14/16] 0, 128
      %265 = vxpose.xlu0.b32.cont [15/16] 0, 128
      %266 = vxpose.xlu0.b32.end [16/16] 0, 128
      %v267 = vpop.trf.xlu0
      %v268 = vpop.trf.xlu0
      %v269 = vpop.trf.xlu0
      %v270 = vpop.trf.xlu0
      %v271 = vpop.trf.xlu0
      %v272 = vpop.trf.xlu0
      %v273 = vpop.trf.xlu0
      %v274 = vpop.trf.xlu0
      %v275 = vpop.trf.xlu0
      %v276 = vpop.trf.xlu0
      %v277 = vpop.trf.xlu0
      %v278 = vpop.trf.xlu0
      %v279 = vpop.trf.xlu0
      %v280 = vpop.trf.xlu0
      %v281 = vpop.trf.xlu0
      %v282 = vpop.trf.xlu0
      %283 = vxpose.xlu0.b32.start [1/16] %v250, 128
      %284 = vxpose.xlu0.b32.cont [2/16] 0, 128
      %285 = vxpose.xlu0.b32.cont [3/16] 0, 128
      %286 = vxpose.xlu0.b32.cont [4/16] 0, 128
      %287 = vxpose.xlu0.b32.cont [5/16] 0, 128
      %288 = vxpose.xlu0.b32.cont [6/16] 0, 128
      %289 = vxpose.xlu0.b32.cont [7/16] 0, 128
      %290 = vxpose.xlu0.b32.cont [8/16] 0, 128
      %291 = vxpose.xlu0.b32.cont [9/16] 0, 128
      %292 = vxpose.xlu0.b32.cont [10/16] 0, 128
      %293 = vxpose.xlu0.b32.cont [11/16] 0, 128
      %294 = vxpose.xlu0.b32.cont [12/16] 0, 128
      %295 = vxpose.xlu0.b32.cont [13/16] 0, 128
      %296 = vxpose.xlu0.b32.cont [14/16] 0, 128
      %297 = vxpose.xlu0.b32.cont [15/16] 0, 128
      %298 = vxpose.xlu0.b32.end [16/16] 0, 128
      %v299 = vpop.trf.xlu0
      %v300 = vpop.trf.xlu0
      %v301 = vpop.trf.xlu0
      %v302 = vpop.trf.xlu0
      %v303 = vpop.trf.xlu0
      %v304 = vpop.trf.xlu0
      %v305 = vpop.trf.xlu0
      %v306 = vpop.trf.xlu0
      %v307 = vpop.trf.xlu0
      %v308 = vpop.trf.xlu0
      %v309 = vpop.trf.xlu0
      %v310 = vpop.trf.xlu0
      %v311 = vpop.trf.xlu0
      %v312 = vpop.trf.xlu0
      %v313 = vpop.trf.xlu0
      %v314 = vpop.trf.xlu0
      %v315 = vlaneseq
      %v316 = vand.u32 %v315, 127
      %317 = vset.pattern.permute.xlu0 0
      %318 = vperm.xlu0 %317, %v267
      %v319 = vpop.permute.xlu0 %318
      %320 = vset.pattern.permute.xlu0 0
      %321 = vperm.xlu0 %320, %v268
      %v322 = vpop.permute.xlu0 %321
      %323 = vset.pattern.permute.xlu0 0
      %324 = vperm.xlu0 %323, %v269
      %v325 = vpop.permute.xlu0 %324
      %326 = vset.pattern.permute.xlu0 0
      %327 = vperm.xlu0 %326, %v270
      %v328 = vpop.permute.xlu0 %327
      %329 = vset.pattern.permute.xlu0 0
      %330 = vperm.xlu0 %329, %v271
      %v331 = vpop.permute.xlu0 %330
      %332 = vset.pattern.permute.xlu0 0
      %333 = vperm.xlu0 %332, %v272
      %v334 = vpop.permute.xlu0 %333
      %335 = vset.pattern.permute.xlu0 0
      %336 = vperm.xlu0 %335, %v273
      %v337 = vpop.permute.xlu0 %336
      %338 = vset.pattern.permute.xlu0 0
      %339 = vperm.xlu0 %338, %v274
      %v340 = vpop.permute.xlu0 %339
      %341 = vset.pattern.permute.xlu0 0
      %342 = vperm.xlu0 %341, %v275
      %v343 = vpop.permute.xlu0 %342
      %344 = vset.pattern.permute.xlu0 0
      %345 = vperm.xlu0 %344, %v276
      %v346 = vpop.permute.xlu0 %345
      %347 = vset.pattern.permute.xlu0 0
      %348 = vperm.xlu0 %347, %v277
      %v349 = vpop.permute.xlu0 %348
      %350 = vset.pattern.permute.xlu0 0
      %351 = vperm.xlu0 %350, %v278
      %v352 = vpop.permute.xlu0 %351
      %353 = vset.pattern.permute.xlu0 0
      %354 = vperm.xlu0 %353, %v279
      %v355 = vpop.permute.xlu0 %354
      %356 = vset.pattern.permute.xlu0 0
      %357 = vperm.xlu0 %356, %v280
      %v358 = vpop.permute.xlu0 %357
      %359 = vset.pattern.permute.xlu0 0
      %360 = vperm.xlu0 %359, %v281
      %v361 = vpop.permute.xlu0 %360
      %362 = vset.pattern.permute.xlu0 0
      %363 = vperm.xlu0 %362, %v282
      %v364 = vpop.permute.xlu0 %363
      %365 = vset.pattern.permute.xlu0 0
      %366 = vperm.xlu0 %365, %v299
      %v367 = vpop.permute.xlu0 %366
      %368 = vset.pattern.permute.xlu0 0
      %369 = vperm.xlu0 %368, %v300
      %v370 = vpop.permute.xlu0 %369
      %371 = vset.pattern.permute.xlu0 0
      %372 = vperm.xlu0 %371, %v301
      %v373 = vpop.permute.xlu0 %372
      %374 = vset.pattern.permute.xlu0 0
      %375 = vperm.xlu0 %374, %v302
      %v376 = vpop.permute.xlu0 %375
      %377 = vset.pattern.permute.xlu0 0
      %378 = vperm.xlu0 %377, %v303
      %v379 = vpop.permute.xlu0 %378
      %380 = vset.pattern.permute.xlu0 0
      %381 = vperm.xlu0 %380, %v304
      %v382 = vpop.permute.xlu0 %381
      %383 = vset.pattern.permute.xlu0 0
      %384 = vperm.xlu0 %383, %v305
      %v385 = vpop.permute.xlu0 %384
      %386 = vset.pattern.permute.xlu0 0
      %387 = vperm.xlu0 %386, %v306
      %v388 = vpop.permute.xlu0 %387
      %389 = vset.pattern.permute.xlu0 0
      %390 = vperm.xlu0 %389, %v307
      %v391 = vpop.permute.xlu0 %390
      %392 = vset.pattern.permute.xlu0 0
      %393 = vperm.xlu0 %392, %v308
      %v394 = vpop.permute.xlu0 %393
      %395 = vset.pattern.permute.xlu0 0
      %396 = vperm.xlu0 %395, %v309
      %v397 = vpop.permute.xlu0 %396
      %398 = vset.pattern.permute.xlu0 0
      %399 = vperm.xlu0 %398, %v310
      %v400 = vpop.permute.xlu0 %399
      %401 = vset.pattern.permute.xlu0 0
      %402 = vperm.xlu0 %401, %v311
      %v403 = vpop.permute.xlu0 %402
      %404 = vset.pattern.permute.xlu0 0
      %405 = vperm.xlu0 %404, %v312
      %v406 = vpop.permute.xlu0 %405
      %407 = vset.pattern.permute.xlu0 0
      %408 = vperm.xlu0 %407, %v313
      %v409 = vpop.permute.xlu0 %408
      %410 = vset.pattern.permute.xlu0 0
      %411 = vperm.xlu0 %410, %v314
      %v412 = vpop.permute.xlu0 %411
      %vm413 = vcmp.eq.s32.totalorder %v316, %v319
      %vm414 = vcmp.eq.s32.totalorder %v316, %v322
      %vm415 = vcmp.eq.s32.totalorder %v316, %v325
      %vm416 = vcmp.eq.s32.totalorder %v316, %v328
      %vm417 = vcmp.eq.s32.totalorder %v316, %v331
      %vm418 = vcmp.eq.s32.totalorder %v316, %v334
      %vm419 = vcmp.eq.s32.totalorder %v316, %v337
      %vm420 = vcmp.eq.s32.totalorder %v316, %v340
      %vm421 = vcmp.eq.s32.totalorder %v316, %v343
      %vm422 = vcmp.eq.s32.totalorder %v316, %v346
      %vm423 = vcmp.eq.s32.totalorder %v316, %v349
      %vm424 = vcmp.eq.s32.totalorder %v316, %v352
      %vm425 = vcmp.eq.s32.totalorder %v316, %v355
      %vm426 = vcmp.eq.s32.totalorder %v316, %v358
      %vm427 = vcmp.eq.s32.totalorder %v316, %v361
      %vm428 = vcmp.eq.s32.totalorder %v316, %v364
      %vm429 = vcmp.eq.s32.totalorder %v316, %v367
      %vm430 = vcmp.eq.s32.totalorder %v316, %v370
      %vm431 = vcmp.eq.s32.totalorder %v316, %v373
      %vm432 = vcmp.eq.s32.totalorder %v316, %v376
      %vm433 = vcmp.eq.s32.totalorder %v316, %v379
      %vm434 = vcmp.eq.s32.totalorder %v316, %v382
      %vm435 = vcmp.eq.s32.totalorder %v316, %v385
      %vm436 = vcmp.eq.s32.totalorder %v316, %v388
      %vm437 = vcmp.eq.s32.totalorder %v316, %v391
      %vm438 = vcmp.eq.s32.totalorder %v316, %v394
      %vm439 = vcmp.eq.s32.totalorder %v316, %v397
      %vm440 = vcmp.eq.s32.totalorder %v316, %v400
      %vm441 = vcmp.eq.s32.totalorder %v316, %v403
      %vm442 = vcmp.eq.s32.totalorder %v316, %v406
      %vm443 = vcmp.eq.s32.totalorder %v316, %v409
      %vm444 = vcmp.eq.s32.totalorder %v316, %v412
      %vm445 = vcmask 171008
      %v446 = vsel %vm445, %v210, -inf
      %447 = vmax.xlane.f32.xlu0 %v446
      %v448 = vpop.xlane.xlu0 %447
      %v449 = vsel %vm445, %v211, -inf
      %450 = vmax.xlane.f32.xlu0 %v449
      %v451 = vpop.xlane.xlu0 %450
      %v452 = vsel %vm445, %v212, -inf
      %453 = vmax.xlane.f32.xlu0 %v452
      %v454 = vpop.xlane.xlu0 %453
      %v455 = vsel %vm445, %v213, -inf
      %456 = vmax.xlane.f32.xlu0 %v455
      %v457 = vpop.xlane.xlu0 %456
      %v458 = vsel %vm445, %v214, -inf
      %459 = vmax.xlane.f32.xlu0 %v458
      %v460 = vpop.xlane.xlu0 %459
      %v461 = vsel %vm445, %v215, -inf
      %462 = vmax.xlane.f32.xlu0 %v461
      %v463 = vpop.xlane.xlu0 %462
      %v464 = vsel %vm445, %v216, -inf
      %465 = vmax.xlane.f32.xlu0 %v464
      %v466 = vpop.xlane.xlu0 %465
      %v467 = vsel %vm445, %v217, -inf
      %468 = vmax.xlane.f32.xlu0 %v467
      %v469 = vpop.xlane.xlu0 %468
      %v470 = vsel %vm445, %v218, -inf
      %471 = vmax.xlane.f32.xlu0 %v470
      %v472 = vpop.xlane.xlu0 %471
      %v473 = vsel %vm445, %v219, -inf
      %474 = vmax.xlane.f32.xlu0 %v473
      %v475 = vpop.xlane.xlu0 %474
      %v476 = vsel %vm445, %v220, -inf
      %477 = vmax.xlane.f32.xlu0 %v476
      %v478 = vpop.xlane.xlu0 %477
      %v479 = vsel %vm445, %v221, -inf
      %480 = vmax.xlane.f32.xlu0 %v479
      %v481 = vpop.xlane.xlu0 %480
      %v482 = vsel %vm445, %v222, -inf
      %483 = vmax.xlane.f32.xlu0 %v482
      %v484 = vpop.xlane.xlu0 %483
      %v485 = vsel %vm445, %v223, -inf
      %486 = vmax.xlane.f32.xlu0 %v485
      %v487 = vpop.xlane.xlu0 %486
      %v488 = vsel %vm445, %v224, -inf
      %489 = vmax.xlane.f32.xlu0 %v488
      %v490 = vpop.xlane.xlu0 %489
      %v491 = vsel %vm445, %v225, -inf
      %492 = vmax.xlane.f32.xlu0 %v491
      %v493 = vpop.xlane.xlu0 %492
      %v494 = vsel %vm445, %v226, -inf
      %495 = vmax.xlane.f32.xlu0 %v494
      %v496 = vpop.xlane.xlu0 %495
      %v497 = vsel %vm445, %v227, -inf
      %498 = vmax.xlane.f32.xlu0 %v497
      %v499 = vpop.xlane.xlu0 %498
      %v500 = vsel %vm445, %v228, -inf
      %501 = vmax.xlane.f32.xlu0 %v500
      %v502 = vpop.xlane.xlu0 %501
      %v503 = vsel %vm445, %v229, -inf
      %504 = vmax.xlane.f32.xlu0 %v503
      %v505 = vpop.xlane.xlu0 %504
      %v506 = vsel %vm445, %v230, -inf
      %507 = vmax.xlane.f32.xlu0 %v506
      %v508 = vpop.xlane.xlu0 %507
      %v509 = vsel %vm445, %v231, -inf
      %510 = vmax.xlane.f32.xlu0 %v509
      %v511 = vpop.xlane.xlu0 %510
      %v512 = vsel %vm445, %v232, -inf
      %513 = vmax.xlane.f32.xlu0 %v512
      %v514 = vpop.xlane.xlu0 %513
      %v515 = vsel %vm445, %v233, -inf
      %516 = vmax.xlane.f32.xlu0 %v515
      %v517 = vpop.xlane.xlu0 %516
      %v518 = vsel %vm445, %v234, -inf
      %519 = vmax.xlane.f32.xlu0 %v518
      %v520 = vpop.xlane.xlu0 %519
      %v521 = vsel %vm445, %v235, -inf
      %522 = vmax.xlane.f32.xlu0 %v521
      %v523 = vpop.xlane.xlu0 %522
      %v524 = vsel %vm445, %v236, -inf
      %525 = vmax.xlane.f32.xlu0 %v524
      %v526 = vpop.xlane.xlu0 %525
      %v527 = vsel %vm445, %v237, -inf
      %528 = vmax.xlane.f32.xlu0 %v527
      %v529 = vpop.xlane.xlu0 %528
      %v530 = vsel %vm445, %v238, -inf
      %531 = vmax.xlane.f32.xlu0 %v530
      %v532 = vpop.xlane.xlu0 %531
      %v533 = vsel %vm445, %v239, -inf
      %534 = vmax.xlane.f32.xlu0 %v533
      %v535 = vpop.xlane.xlu0 %534
      %v536 = vsel %vm445, %v240, -inf
      %537 = vmax.xlane.f32.xlu0 %v536
      %v538 = vpop.xlane.xlu0 %537
      %v539 = vsel %vm445, %v241, -inf
      %540 = vmax.xlane.f32.xlu0 %v539
      %v541 = vpop.xlane.xlu0 %540
      %v542 = vsub.f32 %v210, %v448
      %v543 = vsub.f32 %v211, %v451
      %v544 = vsub.f32 %v212, %v454
      %v545 = vsub.f32 %v213, %v457
      %v546 = vsub.f32 %v214, %v460
      %v547 = vsub.f32 %v215, %v463
      %v548 = vsub.f32 %v216, %v466
      %v549 = vsub.f32 %v217, %v469
      %v550 = vsub.f32 %v218, %v472
      %v551 = vsub.f32 %v219, %v475
      %v552 = vsub.f32 %v220, %v478
      %v553 = vsub.f32 %v221, %v481
      %v554 = vsub.f32 %v222, %v484
      %v555 = vsub.f32 %v223, %v487
      %v556 = vsub.f32 %v224, %v490
      %v557 = vsub.f32 %v225, %v493
      %v558 = vsub.f32 %v226, %v496
      %v559 = vsub.f32 %v227, %v499
      %v560 = vsub.f32 %v228, %v502
      %v561 = vsub.f32 %v229, %v505
      %v562 = vsub.f32 %v230, %v508
      %v563 = vsub.f32 %v231, %v511
      %v564 = vsub.f32 %v232, %v514
      %v565 = vsub.f32 %v233, %v517
      %v566 = vsub.f32 %v234, %v520
      %v567 = vsub.f32 %v235, %v523
      %v568 = vsub.f32 %v236, %v526
      %v569 = vsub.f32 %v237, %v529
      %v570 = vsub.f32 %v238, %v532
      %v571 = vsub.f32 %v239, %v535
      %v572 = vsub.f32 %v240, %v538
      %v573 = vsub.f32 %v241, %v541
      %v574 = vmul.f32 %v542, 1.442695
      %v575 = vpow.pop %v574
      %v576 = vmul.f32 %v543, 1.442695
      %v577 = vpow.pop %v576
      %v578 = vmul.f32 %v544, 1.442695
      %v579 = vpow.pop %v578
      %v580 = vmul.f32 %v545, 1.442695
      %v581 = vpow.pop %v580
      %v582 = vmul.f32 %v546, 1.442695
      %v583 = vpow.pop %v582
      %v584 = vmul.f32 %v547, 1.442695
      %v585 = vpow.pop %v584
      %v586 = vmul.f32 %v548, 1.442695
      %v587 = vpow.pop %v586
      %v588 = vmul.f32 %v549, 1.442695
      %v589 = vpow.pop %v588
      %v590 = vmul.f32 %v550, 1.442695
      %v591 = vpow.pop %v590
      %v592 = vmul.f32 %v551, 1.442695
      %v593 = vpow.pop %v592
      %v594 = vmul.f32 %v552, 1.442695
      %v595 = vpow.pop %v594
      %v596 = vmul.f32 %v553, 1.442695
      %v597 = vpow.pop %v596
      %v598 = vmul.f32 %v554, 1.442695
      %v599 = vpow.pop %v598
      %v600 = vmul.f32 %v555, 1.442695
      %v601 = vpow.pop %v600
      %v602 = vmul.f32 %v556, 1.442695
      %v603 = vpow.pop %v602
      %v604 = vmul.f32 %v557, 1.442695
      %v605 = vpow.pop %v604
      %v606 = vmul.f32 %v558, 1.442695
      %v607 = vpow.pop %v606
      %v608 = vmul.f32 %v559, 1.442695
      %v609 = vpow.pop %v608
      %v610 = vmul.f32 %v560, 1.442695
      %v611 = vpow.pop %v610
      %v612 = vmul.f32 %v561, 1.442695
      %v613 = vpow.pop %v612
      %v614 = vmul.f32 %v562, 1.442695
      %v615 = vpow.pop %v614
      %v616 = vmul.f32 %v563, 1.442695
      %v617 = vpow.pop %v616
      %v618 = vmul.f32 %v564, 1.442695
      %v619 = vpow.pop %v618
      %v620 = vmul.f32 %v565, 1.442695
      %v621 = vpow.pop %v620
      %v622 = vmul.f32 %v566, 1.442695
      %v623 = vpow.pop %v622
      %v624 = vmul.f32 %v567, 1.442695
      %v625 = vpow.pop %v624
      %v626 = vmul.f32 %v568, 1.442695
      %v627 = vpow.pop %v626
      %v628 = vmul.f32 %v569, 1.442695
      %v629 = vpow.pop %v628
      %v630 = vmul.f32 %v570, 1.442695
      %v631 = vpow.pop %v630
      %v632 = vmul.f32 %v571, 1.442695
      %v633 = vpow.pop %v632
      %v634 = vmul.f32 %v572, 1.442695
      %v635 = vpow.pop %v634
      %v636 = vmul.f32 %v573, 1.442695
      %v637 = vpow.pop %v636
      %v638 = vsel %vm445, %v575, 0.0
      %639 = vadd.xlane.f32.xlu0 %v638
      %v640 = vpop.xlane.xlu0 %639
      %v641 = vsel %vm445, %v577, 0.0
      %642 = vadd.xlane.f32.xlu0 %v641
      %v643 = vpop.xlane.xlu0 %642
      %v644 = vsel %vm445, %v579, 0.0
      %645 = vadd.xlane.f32.xlu0 %v644
      %v646 = vpop.xlane.xlu0 %645
      %v647 = vsel %vm445, %v581, 0.0
      %648 = vadd.xlane.f32.xlu0 %v647
      %v649 = vpop.xlane.xlu0 %648
      %v650 = vsel %vm445, %v583, 0.0
      %651 = vadd.xlane.f32.xlu0 %v650
      %v652 = vpop.xlane.xlu0 %651
      %v653 = vsel %vm445, %v585, 0.0
      %654 = vadd.xlane.f32.xlu0 %v653
      %v655 = vpop.xlane.xlu0 %654
      %v656 = vsel %vm445, %v587, 0.0
      %657 = vadd.xlane.f32.xlu0 %v656
      %v658 = vpop.xlane.xlu0 %657
      %v659 = vsel %vm445, %v589, 0.0
      %660 = vadd.xlane.f32.xlu0 %v659
      %v661 = vpop.xlane.xlu0 %660
      %v662 = vsel %vm445, %v591, 0.0
      %663 = vadd.xlane.f32.xlu0 %v662
      %v664 = vpop.xlane.xlu0 %663
      %v665 = vsel %vm445, %v593, 0.0
      %666 = vadd.xlane.f32.xlu0 %v665
      %v667 = vpop.xlane.xlu0 %666
      %v668 = vsel %vm445, %v595, 0.0
      %669 = vadd.xlane.f32.xlu0 %v668
      %v670 = vpop.xlane.xlu0 %669
      %v671 = vsel %vm445, %v597, 0.0
      %672 = vadd.xlane.f32.xlu0 %v671
      %v673 = vpop.xlane.xlu0 %672
      %v674 = vsel %vm445, %v599, 0.0
      %675 = vadd.xlane.f32.xlu0 %v674
      %v676 = vpop.xlane.xlu0 %675
      %v677 = vsel %vm445, %v601, 0.0
      %678 = vadd.xlane.f32.xlu0 %v677
      %v679 = vpop.xlane.xlu0 %678
      %v680 = vsel %vm445, %v603, 0.0
      %681 = vadd.xlane.f32.xlu0 %v680
      %v682 = vpop.xlane.xlu0 %681
      %v683 = vsel %vm445, %v605, 0.0
      %684 = vadd.xlane.f32.xlu0 %v683
      %v685 = vpop.xlane.xlu0 %684
      %v686 = vsel %vm445, %v607, 0.0
      %687 = vadd.xlane.f32.xlu0 %v686
      %v688 = vpop.xlane.xlu0 %687
      %v689 = vsel %vm445, %v609, 0.0
      %690 = vadd.xlane.f32.xlu0 %v689
      %v691 = vpop.xlane.xlu0 %690
      %v692 = vsel %vm445, %v611, 0.0
      %693 = vadd.xlane.f32.xlu0 %v692
      %v694 = vpop.xlane.xlu0 %693
      %v695 = vsel %vm445, %v613, 0.0
      %696 = vadd.xlane.f32.xlu0 %v695
      %v697 = vpop.xlane.xlu0 %696
      %v698 = vsel %vm445, %v615, 0.0
      %699 = vadd.xlane.f32.xlu0 %v698
      %v700 = vpop.xlane.xlu0 %699
      %v701 = vsel %vm445, %v617, 0.0
      %702 = vadd.xlane.f32.xlu0 %v701
      %v703 = vpop.xlane.xlu0 %702
      %v704 = vsel %vm445, %v619, 0.0
      %705 = vadd.xlane.f32.xlu0 %v704
      %v706 = vpop.xlane.xlu0 %705
      %v707 = vsel %vm445, %v621, 0.0
      %708 = vadd.xlane.f32.xlu0 %v707
      %v709 = vpop.xlane.xlu0 %708
      %v710 = vsel %vm445, %v623, 0.0
      %711 = vadd.xlane.f32.xlu0 %v710
      %v712 = vpop.xlane.xlu0 %711
      %v713 = vsel %vm445, %v625, 0.0
      %714 = vadd.xlane.f32.xlu0 %v713
      %v715 = vpop.xlane.xlu0 %714
      %v716 = vsel %vm445, %v627, 0.0
      %717 = vadd.xlane.f32.xlu0 %v716
      %v718 = vpop.xlane.xlu0 %717
      %v719 = vsel %vm445, %v629, 0.0
      %720 = vadd.xlane.f32.xlu0 %v719
      %v721 = vpop.xlane.xlu0 %720
      %v722 = vsel %vm445, %v631, 0.0
      %723 = vadd.xlane.f32.xlu0 %v722
      %v724 = vpop.xlane.xlu0 %723
      %v725 = vsel %vm445, %v633, 0.0
      %726 = vadd.xlane.f32.xlu0 %v725
      %v727 = vpop.xlane.xlu0 %726
      %v728 = vsel %vm445, %v635, 0.0
      %729 = vadd.xlane.f32.xlu0 %v728
      %v730 = vpop.xlane.xlu0 %729
      %v731 = vsel %vm445, %v637, 0.0
      %732 = vadd.xlane.f32.xlu0 %v731
      %v733 = vpop.xlane.xlu0 %732
      %v734 = vsel %vm413, %v210, 0.0
      %v735 = vsel %vm414, %v211, 0.0
      %v736 = vsel %vm415, %v212, 0.0
      %v737 = vsel %vm416, %v213, 0.0
      %v738 = vsel %vm417, %v214, 0.0
      %v739 = vsel %vm418, %v215, 0.0
      %v740 = vsel %vm419, %v216, 0.0
      %v741 = vsel %vm420, %v217, 0.0
      %v742 = vsel %vm421, %v218, 0.0
      %v743 = vsel %vm422, %v219, 0.0
      %v744 = vsel %vm423, %v220, 0.0
      %v745 = vsel %vm424, %v221, 0.0
      %v746 = vsel %vm425, %v222, 0.0
      %v747 = vsel %vm426, %v223, 0.0
      %v748 = vsel %vm427, %v224, 0.0
      %v749 = vsel %vm428, %v225, 0.0
      %v750 = vsel %vm429, %v226, 0.0
      %v751 = vsel %vm430, %v227, 0.0
      %v752 = vsel %vm431, %v228, 0.0
      %v753 = vsel %vm432, %v229, 0.0
      %v754 = vsel %vm433, %v230, 0.0
      %v755 = vsel %vm434, %v231, 0.0
      %v756 = vsel %vm435, %v232, 0.0
      %v757 = vsel %vm436, %v233, 0.0
      %v758 = vsel %vm437, %v234, 0.0
      %v759 = vsel %vm438, %v235, 0.0
      %v760 = vsel %vm439, %v236, 0.0
      %v761 = vsel %vm440, %v237, 0.0
      %v762 = vsel %vm441, %v238, 0.0
      %v763 = vsel %vm442, %v239, 0.0
      %v764 = vsel %vm443, %v240, 0.0
      %v765 = vsel %vm444, %v241, 0.0
      %v766 = vsel %vm445, %v734, 0.0
      %767 = vadd.xlane.f32.xlu0 %v766
      %v768 = vpop.xlane.xlu0 %767
      %v769 = vsel %vm445, %v735, 0.0
      %770 = vadd.xlane.f32.xlu0 %v769
      %v771 = vpop.xlane.xlu0 %770
      %v772 = vsel %vm445, %v736, 0.0
      %773 = vadd.xlane.f32.xlu0 %v772
      %v774 = vpop.xlane.xlu0 %773
      %v775 = vsel %vm445, %v737, 0.0
      %776 = vadd.xlane.f32.xlu0 %v775
      %v777 = vpop.xlane.xlu0 %776
      %v778 = vsel %vm445, %v738, 0.0
      %779 = vadd.xlane.f32.xlu0 %v778
      %v780 = vpop.xlane.xlu0 %779
      %v781 = vsel %vm445, %v739, 0.0
      %782 = vadd.xlane.f32.xlu0 %v781
      %v783 = vpop.xlane.xlu0 %782
      %v784 = vsel %vm445, %v740, 0.0
      %785 = vadd.xlane.f32.xlu0 %v784
      %v786 = vpop.xlane.xlu0 %785
      %v787 = vsel %vm445, %v741, 0.0
      %788 = vadd.xlane.f32.xlu0 %v787
      %v789 = vpop.xlane.xlu0 %788
      %v790 = vsel %vm445, %v742, 0.0
      %791 = vadd.xlane.f32.xlu0 %v790
      %v792 = vpop.xlane.xlu0 %791
      %v793 = vsel %vm445, %v743, 0.0
      %794 = vadd.xlane.f32.xlu0 %v793
      %v795 = vpop.xlane.xlu0 %794
      %v796 = vsel %vm445, %v744, 0.0
      %797 = vadd.xlane.f32.xlu0 %v796
      %v798 = vpop.xlane.xlu0 %797
      %v799 = vsel %vm445, %v745, 0.0
      %800 = vadd.xlane.f32.xlu0 %v799
      %v801 = vpop.xlane.xlu0 %800
      %v802 = vsel %vm445, %v746, 0.0
      %803 = vadd.xlane.f32.xlu0 %v802
      %v804 = vpop.xlane.xlu0 %803
      %v805 = vsel %vm445, %v747, 0.0
      %806 = vadd.xlane.f32.xlu0 %v805
      %v807 = vpop.xlane.xlu0 %806
      %v808 = vsel %vm445, %v748, 0.0
      %809 = vadd.xlane.f32.xlu0 %v808
      %v810 = vpop.xlane.xlu0 %809
      %v811 = vsel %vm445, %v749, 0.0
      %812 = vadd.xlane.f32.xlu0 %v811
      %v813 = vpop.xlane.xlu0 %812
      %v814 = vsel %vm445, %v750, 0.0
      %815 = vadd.xlane.f32.xlu0 %v814
      %v816 = vpop.xlane.xlu0 %815
      %v817 = vsel %vm445, %v751, 0.0
      %818 = vadd.xlane.f32.xlu0 %v817
      %v819 = vpop.xlane.xlu0 %818
      %v820 = vsel %vm445, %v752, 0.0
      %821 = vadd.xlane.f32.xlu0 %v820
      %v822 = vpop.xlane.xlu0 %821
      %v823 = vsel %vm445, %v753, 0.0
      %824 = vadd.xlane.f32.xlu0 %v823
      %v825 = vpop.xlane.xlu0 %824
      %v826 = vsel %vm445, %v754, 0.0
      %827 = vadd.xlane.f32.xlu0 %v826
      %v828 = vpop.xlane.xlu0 %827
      %v829 = vsel %vm445, %v755, 0.0
      %830 = vadd.xlane.f32.xlu0 %v829
      %v831 = vpop.xlane.xlu0 %830
      %v832 = vsel %vm445, %v756, 0.0
      %833 = vadd.xlane.f32.xlu0 %v832
      %v834 = vpop.xlane.xlu0 %833
      %v835 = vsel %vm445, %v757, 0.0
      %836 = vadd.xlane.f32.xlu0 %v835
      %v837 = vpop.xlane.xlu0 %836
      %v838 = vsel %vm445, %v758, 0.0
      %839 = vadd.xlane.f32.xlu0 %v838
      %v840 = vpop.xlane.xlu0 %839
      %v841 = vsel %vm445, %v759, 0.0
      %842 = vadd.xlane.f32.xlu0 %v841
      %v843 = vpop.xlane.xlu0 %842
      %v844 = vsel %vm445, %v760, 0.0
      %845 = vadd.xlane.f32.xlu0 %v844
      %v846 = vpop.xlane.xlu0 %845
      %v847 = vsel %vm445, %v761, 0.0
      %848 = vadd.xlane.f32.xlu0 %v847
      %v849 = vpop.xlane.xlu0 %848
      %v850 = vsel %vm445, %v762, 0.0
      %851 = vadd.xlane.f32.xlu0 %v850
      %v852 = vpop.xlane.xlu0 %851
      %v853 = vsel %vm445, %v763, 0.0
      %854 = vadd.xlane.f32.xlu0 %v853
      %v855 = vpop.xlane.xlu0 %854
      %v856 = vsel %vm445, %v764, 0.0
      %857 = vadd.xlane.f32.xlu0 %v856
      %v858 = vpop.xlane.xlu0 %857
      %v859 = vsel %vm445, %v765, 0.0
      %860 = vadd.xlane.f32.xlu0 %v859
      %v861 = vpop.xlane.xlu0 %860
      %v862 = vsub.f32 %v768, %v448
      %v863 = vsub.f32 %v771, %v451
      %v864 = vsub.f32 %v774, %v454
      %v865 = vsub.f32 %v777, %v457
      %v866 = vsub.f32 %v780, %v460
      %v867 = vsub.f32 %v783, %v463
      %v868 = vsub.f32 %v786, %v466
      %v869 = vsub.f32 %v789, %v469
      %v870 = vsub.f32 %v792, %v472
      %v871 = vsub.f32 %v795, %v475
      %v872 = vsub.f32 %v798, %v478
      %v873 = vsub.f32 %v801, %v481
      %v874 = vsub.f32 %v804, %v484
      %v875 = vsub.f32 %v807, %v487
      %v876 = vsub.f32 %v810, %v490
      %v877 = vsub.f32 %v813, %v493
      %v878 = vsub.f32 %v816, %v496
      %v879 = vsub.f32 %v819, %v499
      %v880 = vsub.f32 %v822, %v502
      %v881 = vsub.f32 %v825, %v505
      %v882 = vsub.f32 %v828, %v508
      %v883 = vsub.f32 %v831, %v511
      %v884 = vsub.f32 %v834, %v514
      %v885 = vsub.f32 %v837, %v517
      %v886 = vsub.f32 %v840, %v520
      %v887 = vsub.f32 %v843, %v523
      %v888 = vsub.f32 %v846, %v526
      %v889 = vsub.f32 %v849, %v529
      %v890 = vsub.f32 %v852, %v532
      %v891 = vsub.f32 %v855, %v535
      %v892 = vsub.f32 %v858, %v538
      %v893 = vsub.f32 %v861, %v541
      %v894 = vlog2.pop %v640
      %v895 = vmul.f32 %v894, 0.6931472
      %v896 = vlog2.pop %v643
      %v897 = vmul.f32 %v896, 0.6931472
      %v898 = vlog2.pop %v646
      %v899 = vmul.f32 %v898, 0.6931472
      %v900 = vlog2.pop %v649
      %v901 = vmul.f32 %v900, 0.6931472
      %v902 = vlog2.pop %v652
      %v903 = vmul.f32 %v902, 0.6931472
      %v904 = vlog2.pop %v655
      %v905 = vmul.f32 %v904, 0.6931472
      %v906 = vlog2.pop %v658
      %v907 = vmul.f32 %v906, 0.6931472
      %v908 = vlog2.pop %v661
      %v909 = vmul.f32 %v908, 0.6931472
      %v910 = vlog2.pop %v664
      %v911 = vmul.f32 %v910, 0.6931472
      %v912 = vlog2.pop %v667
      %v913 = vmul.f32 %v912, 0.6931472
      %v914 = vlog2.pop %v670
      %v915 = vmul.f32 %v914, 0.6931472
      %v916 = vlog2.pop %v673
      %v917 = vmul.f32 %v916, 0.6931472
      %v918 = vlog2.pop %v676
      %v919 = vmul.f32 %v918, 0.6931472
      %v920 = vlog2.pop %v679
      %v921 = vmul.f32 %v920, 0.6931472
      %v922 = vlog2.pop %v682
      %v923 = vmul.f32 %v922, 0.6931472
      %v924 = vlog2.pop %v685
      %v925 = vmul.f32 %v924, 0.6931472
      %v926 = vlog2.pop %v688
      %v927 = vmul.f32 %v926, 0.6931472
      %v928 = vlog2.pop %v691
      %v929 = vmul.f32 %v928, 0.6931472
      %v930 = vlog2.pop %v694
      %v931 = vmul.f32 %v930, 0.6931472
      %v932 = vlog2.pop %v697
      %v933 = vmul.f32 %v932, 0.6931472
      %v934 = vlog2.pop %v700
      %v935 = vmul.f32 %v934, 0.6931472
      %v936 = vlog2.pop %v703
      %v937 = vmul.f32 %v936, 0.6931472
      %v938 = vlog2.pop %v706
      %v939 = vmul.f32 %v938, 0.6931472
      %v940 = vlog2.pop %v709
      %v941 = vmul.f32 %v940, 0.6931472
      %v942 = vlog2.pop %v712
      %v943 = vmul.f32 %v942, 0.6931472
      %v944 = vlog2.pop %v715
      %v945 = vmul.f32 %v944, 0.6931472
      %v946 = vlog2.pop %v718
      %v947 = vmul.f32 %v946, 0.6931472
      %v948 = vlog2.pop %v721
      %v949 = vmul.f32 %v948, 0.6931472
      %v950 = vlog2.pop %v724
      %v951 = vmul.f32 %v950, 0.6931472
      %v952 = vlog2.pop %v727
      %v953 = vmul.f32 %v952, 0.6931472
      %v954 = vlog2.pop %v730
      %v955 = vmul.f32 %v954, 0.6931472
      %v956 = vlog2.pop %v733
      %v957 = vmul.f32 %v956, 0.6931472
      %v958 = vsub.f32 %v862, %v895
      %v959 = vsub.f32 %v863, %v897
      %v960 = vsub.f32 %v864, %v899
      %v961 = vsub.f32 %v865, %v901
      %v962 = vsub.f32 %v866, %v903
      %v963 = vsub.f32 %v867, %v905
      %v964 = vsub.f32 %v868, %v907
      %v965 = vsub.f32 %v869, %v909
      %v966 = vsub.f32 %v870, %v911
      %v967 = vsub.f32 %v871, %v913
      %v968 = vsub.f32 %v872, %v915
      %v969 = vsub.f32 %v873, %v917
      %v970 = vsub.f32 %v874, %v919
      %v971 = vsub.f32 %v875, %v921
      %v972 = vsub.f32 %v876, %v923
      %v973 = vsub.f32 %v877, %v925
      %v974 = vsub.f32 %v878, %v927
      %v975 = vsub.f32 %v879, %v929
      %v976 = vsub.f32 %v880, %v931
      %v977 = vsub.f32 %v881, %v933
      %v978 = vsub.f32 %v882, %v935
      %v979 = vsub.f32 %v883, %v937
      %v980 = vsub.f32 %v884, %v939
      %v981 = vsub.f32 %v885, %v941
      %v982 = vsub.f32 %v886, %v943
      %v983 = vsub.f32 %v887, %v945
      %v984 = vsub.f32 %v888, %v947
      %v985 = vsub.f32 %v889, %v949
      %v986 = vsub.f32 %v890, %v951
      %v987 = vsub.f32 %v891, %v953
      %v988 = vsub.f32 %v892, %v955
      %v989 = vsub.f32 %v893, %v957
      %v990 = vmul.f32 %v958, 1.442695
      %v991 = vpow.pop %v990
      %v992 = vmul.f32 %v959, 1.442695
      %v993 = vpow.pop %v992
      %v994 = vmul.f32 %v960, 1.442695
      %v995 = vpow.pop %v994
      %v996 = vmul.f32 %v961, 1.442695
      %v997 = vpow.pop %v996
      %v998 = vmul.f32 %v962, 1.442695
      %v999 = vpow.pop %v998
      %v1000 = vmul.f32 %v963, 1.442695
      %v1001 = vpow.pop %v1000
      %v1002 = vmul.f32 %v964, 1.442695
      %v1003 = vpow.pop %v1002
      %v1004 = vmul.f32 %v965, 1.442695
      %v1005 = vpow.pop %v1004
      %v1006 = vmul.f32 %v966, 1.442695
      %v1007 = vpow.pop %v1006
      %v1008 = vmul.f32 %v967, 1.442695
      %v1009 = vpow.pop %v1008
      %v1010 = vmul.f32 %v968, 1.442695
      %v1011 = vpow.pop %v1010
      %v1012 = vmul.f32 %v969, 1.442695
      %v1013 = vpow.pop %v1012
      %v1014 = vmul.f32 %v970, 1.442695
      %v1015 = vpow.pop %v1014
      %v1016 = vmul.f32 %v971, 1.442695
      %v1017 = vpow.pop %v1016
      %v1018 = vmul.f32 %v972, 1.442695
      %v1019 = vpow.pop %v1018
      %v1020 = vmul.f32 %v973, 1.442695
      %v1021 = vpow.pop %v1020
      %v1022 = vmul.f32 %v974, 1.442695
      %v1023 = vpow.pop %v1022
      %v1024 = vmul.f32 %v975, 1.442695
      %v1025 = vpow.pop %v1024
      %v1026 = vmul.f32 %v976, 1.442695
      %v1027 = vpow.pop %v1026
      %v1028 = vmul.f32 %v977, 1.442695
      %v1029 = vpow.pop %v1028
      %v1030 = vmul.f32 %v978, 1.442695
      %v1031 = vpow.pop %v1030
      %v1032 = vmul.f32 %v979, 1.442695
      %v1033 = vpow.pop %v1032
      %v1034 = vmul.f32 %v980, 1.442695
      %v1035 = vpow.pop %v1034
      %v1036 = vmul.f32 %v981, 1.442695
      %v1037 = vpow.pop %v1036
      %v1038 = vmul.f32 %v982, 1.442695
      %v1039 = vpow.pop %v1038
      %v1040 = vmul.f32 %v983, 1.442695
      %v1041 = vpow.pop %v1040
      %v1042 = vmul.f32 %v984, 1.442695
      %v1043 = vpow.pop %v1042
      %v1044 = vmul.f32 %v985, 1.442695
      %v1045 = vpow.pop %v1044
      %v1046 = vmul.f32 %v986, 1.442695
      %v1047 = vpow.pop %v1046
      %v1048 = vmul.f32 %v987, 1.442695
      %v1049 = vpow.pop %v1048
      %v1050 = vmul.f32 %v988, 1.442695
      %v1051 = vpow.pop %v1050
      %v1052 = vmul.f32 %v989, 1.442695
      %v1053 = vpow.pop %v1052
      %v1054 = vsub.f32 1.0, %v991
      %v1055 = vsub.f32 1.0, %v993
      %v1056 = vsub.f32 1.0, %v995
      %v1057 = vsub.f32 1.0, %v997
      %v1058 = vsub.f32 1.0, %v999
      %v1059 = vsub.f32 1.0, %v1001
      %v1060 = vsub.f32 1.0, %v1003
      %v1061 = vsub.f32 1.0, %v1005
      %v1062 = vsub.f32 1.0, %v1007
      %v1063 = vsub.f32 1.0, %v1009
      %v1064 = vsub.f32 1.0, %v1011
      %v1065 = vsub.f32 1.0, %v1013
      %v1066 = vsub.f32 1.0, %v1015
      %v1067 = vsub.f32 1.0, %v1017
      %v1068 = vsub.f32 1.0, %v1019
      %v1069 = vsub.f32 1.0, %v1021
      %v1070 = vsub.f32 1.0, %v1023
      %v1071 = vsub.f32 1.0, %v1025
      %v1072 = vsub.f32 1.0, %v1027
      %v1073 = vsub.f32 1.0, %v1029
      %v1074 = vsub.f32 1.0, %v1031
      %v1075 = vsub.f32 1.0, %v1033
      %v1076 = vsub.f32 1.0, %v1035
      %v1077 = vsub.f32 1.0, %v1037
      %v1078 = vsub.f32 1.0, %v1039
      %v1079 = vsub.f32 1.0, %v1041
      %v1080 = vsub.f32 1.0, %v1043
      %v1081 = vsub.f32 1.0, %v1045
      %v1082 = vsub.f32 1.0, %v1047
      %v1083 = vsub.f32 1.0, %v1049
      %v1084 = vsub.f32 1.0, %v1051
      %v1085 = vsub.f32 1.0, %v1053
      %v1086 = vmul.f32 %v1054, %v1054
      %v1087 = vmul.f32 %v1055, %v1055
      %v1088 = vmul.f32 %v1056, %v1056
      %v1089 = vmul.f32 %v1057, %v1057
      %v1090 = vmul.f32 %v1058, %v1058
      %v1091 = vmul.f32 %v1059, %v1059
      %v1092 = vmul.f32 %v1060, %v1060
      %v1093 = vmul.f32 %v1061, %v1061
      %v1094 = vmul.f32 %v1062, %v1062
      %v1095 = vmul.f32 %v1063, %v1063
      %v1096 = vmul.f32 %v1064, %v1064
      %v1097 = vmul.f32 %v1065, %v1065
      %v1098 = vmul.f32 %v1066, %v1066
      %v1099 = vmul.f32 %v1067, %v1067
      %v1100 = vmul.f32 %v1068, %v1068
      %v1101 = vmul.f32 %v1069, %v1069
      %v1102 = vmul.f32 %v1070, %v1070
      %v1103 = vmul.f32 %v1071, %v1071
      %v1104 = vmul.f32 %v1072, %v1072
      %v1105 = vmul.f32 %v1073, %v1073
      %v1106 = vmul.f32 %v1074, %v1074
      %v1107 = vmul.f32 %v1075, %v1075
      %v1108 = vmul.f32 %v1076, %v1076
      %v1109 = vmul.f32 %v1077, %v1077
      %v1110 = vmul.f32 %v1078, %v1078
      %v1111 = vmul.f32 %v1079, %v1079
      %v1112 = vmul.f32 %v1080, %v1080
      %v1113 = vmul.f32 %v1081, %v1081
      %v1114 = vmul.f32 %v1082, %v1082
      %v1115 = vmul.f32 %v1083, %v1083
      %v1116 = vmul.f32 %v1084, %v1084
      %v1117 = vmul.f32 %v1085, %v1085
      %v1118 = vmul.f32 %v1086, %v958
      %v1119 = vmul.f32 %v1087, %v959
      %v1120 = vmul.f32 %v1088, %v960
      %v1121 = vmul.f32 %v1089, %v961
      %v1122 = vmul.f32 %v1090, %v962
      %v1123 = vmul.f32 %v1091, %v963
      %v1124 = vmul.f32 %v1092, %v964
      %v1125 = vmul.f32 %v1093, %v965
      %v1126 = vmul.f32 %v1094, %v966
      %v1127 = vmul.f32 %v1095, %v967
      %v1128 = vmul.f32 %v1096, %v968
      %v1129 = vmul.f32 %v1097, %v969
      %v1130 = vmul.f32 %v1098, %v970
      %v1131 = vmul.f32 %v1099, %v971
      %v1132 = vmul.f32 %v1100, %v972
      %v1133 = vmul.f32 %v1101, %v973
      %v1134 = vmul.f32 %v1102, %v974
      %v1135 = vmul.f32 %v1103, %v975
      %v1136 = vmul.f32 %v1104, %v976
      %v1137 = vmul.f32 %v1105, %v977
      %v1138 = vmul.f32 %v1106, %v978
      %v1139 = vmul.f32 %v1107, %v979
      %v1140 = vmul.f32 %v1108, %v980
      %v1141 = vmul.f32 %v1109, %v981
      %v1142 = vmul.f32 %v1110, %v982
      %v1143 = vmul.f32 %v1111, %v983
      %v1144 = vmul.f32 %v1112, %v984
      %v1145 = vmul.f32 %v1113, %v985
      %v1146 = vmul.f32 %v1114, %v986
      %v1147 = vmul.f32 %v1115, %v987
      %v1148 = vmul.f32 %v1116, %v988
      %v1149 = vmul.f32 %v1117, %v989
      %v1150 = vsub.f32 0.0, %v1118
      %v1151 = vsub.f32 0.0, %v1119
      %v1152 = vsub.f32 0.0, %v1120
      %v1153 = vsub.f32 0.0, %v1121
      %v1154 = vsub.f32 0.0, %v1122
      %v1155 = vsub.f32 0.0, %v1123
      %v1156 = vsub.f32 0.0, %v1124
      %v1157 = vsub.f32 0.0, %v1125
      %v1158 = vsub.f32 0.0, %v1126
      %v1159 = vsub.f32 0.0, %v1127
      %v1160 = vsub.f32 0.0, %v1128
      %v1161 = vsub.f32 0.0, %v1129
      %v1162 = vsub.f32 0.0, %v1130
      %v1163 = vsub.f32 0.0, %v1131
      %v1164 = vsub.f32 0.0, %v1132
      %v1165 = vsub.f32 0.0, %v1133
      %v1166 = vsub.f32 0.0, %v1134
      %v1167 = vsub.f32 0.0, %v1135
      %v1168 = vsub.f32 0.0, %v1136
      %v1169 = vsub.f32 0.0, %v1137
      %v1170 = vsub.f32 0.0, %v1138
      %v1171 = vsub.f32 0.0, %v1139
      %v1172 = vsub.f32 0.0, %v1140
      %v1173 = vsub.f32 0.0, %v1141
      %v1174 = vsub.f32 0.0, %v1142
      %v1175 = vsub.f32 0.0, %v1143
      %v1176 = vsub.f32 0.0, %v1144
      %v1177 = vsub.f32 0.0, %v1145
      %v1178 = vsub.f32 0.0, %v1146
      %v1179 = vsub.f32 0.0, %v1147
      %v1180 = vsub.f32 0.0, %v1148
      %v1181 = vsub.f32 0.0, %v1149
      %v1182 = vlaneseq
      %v1183 = vshrl.u32 %v1182, 7
      %v1184 = vadd.s32 %v1183, 8
      %v1185 = vadd.s32 %v1183, 16
      %v1186 = vadd.s32 %v1183, 24
      %v1187 = vadd.s32 %v1183, 32
      %v1188 = vadd.s32 %v1183, 40
      %v1189 = vadd.s32 %v1183, 48
      %v1190 = vadd.s32 %v1183, 56
      %v1191 = vadd.s32 %v1183, 64
      %v1192 = vadd.s32 %v1183, 72
      %v1193 = vadd.s32 %v1183, 80
      %v1194 = vadd.s32 %v1183, 88
      %v1195 = vadd.s32 %v1183, 96
      %v1196 = vadd.s32 %v1183, 104
      %v1197 = vadd.s32 %v1183, 112
      %v1198 = vadd.s32 %v1183, 120
      %v1199 = vadd.s32 %v1183, 128
      %v1200 = vadd.s32 %v1183, 136
      %v1201 = vadd.s32 %v1183, 144
      %v1202 = vadd.s32 %v1183, 152
      %v1203 = vadd.s32 %v1183, 160
      %v1204 = vadd.s32 %v1183, 168
      %v1205 = vadd.s32 %v1183, 176
      %v1206 = vadd.s32 %v1183, 184
      %v1207 = vadd.s32 %v1183, 192
      %v1208 = vadd.s32 %v1183, 200
      %v1209 = vadd.s32 %v1183, 208
      %v1210 = vadd.s32 %v1183, 216
      %v1211 = vadd.s32 %v1183, 224
      %v1212 = vadd.s32 %v1183, 232
      %v1213 = vadd.s32 %v1183, 240
      %v1214 = vadd.s32 %v1183, 248
      %s1215 = smul.u32 %s14, 256
      %v1216 = vstv %s1215
      %v1217 = vadd.s32 %v1183, %v1216
      %v1218 = vadd.s32 %v1184, %v1216
      %v1219 = vadd.s32 %v1185, %v1216
      %v1220 = vadd.s32 %v1186, %v1216
      %v1221 = vadd.s32 %v1187, %v1216
      %v1222 = vadd.s32 %v1188, %v1216
      %v1223 = vadd.s32 %v1189, %v1216
      %v1224 = vadd.s32 %v1190, %v1216
      %v1225 = vadd.s32 %v1191, %v1216
      %v1226 = vadd.s32 %v1192, %v1216
      %v1227 = vadd.s32 %v1193, %v1216
      %v1228 = vadd.s32 %v1194, %v1216
      %v1229 = vadd.s32 %v1195, %v1216
      %v1230 = vadd.s32 %v1196, %v1216
      %v1231 = vadd.s32 %v1197, %v1216
      %v1232 = vadd.s32 %v1198, %v1216
      %v1233 = vadd.s32 %v1199, %v1216
      %v1234 = vadd.s32 %v1200, %v1216
      %v1235 = vadd.s32 %v1201, %v1216
      %v1236 = vadd.s32 %v1202, %v1216
      %v1237 = vadd.s32 %v1203, %v1216
      %v1238 = vadd.s32 %v1204, %v1216
      %v1239 = vadd.s32 %v1205, %v1216
      %v1240 = vadd.s32 %v1206, %v1216
      %v1241 = vadd.s32 %v1207, %v1216
      %v1242 = vadd.s32 %v1208, %v1216
      %v1243 = vadd.s32 %v1209, %v1216
      %v1244 = vadd.s32 %v1210, %v1216
      %v1245 = vadd.s32 %v1211, %v1216
      %v1246 = vadd.s32 %v1212, %v1216
      %v1247 = vadd.s32 %v1213, %v1216
      %v1248 = vadd.s32 %v1214, %v1216
      %vm1249 = vcmp.lt.s32.totalorder %v1217, 1000
      %vm1250 = vcmp.lt.s32.totalorder %v1218, 1000
      %vm1251 = vcmp.lt.s32.totalorder %v1219, 1000
      %vm1252 = vcmp.lt.s32.totalorder %v1220, 1000
      %vm1253 = vcmp.lt.s32.totalorder %v1221, 1000
      %vm1254 = vcmp.lt.s32.totalorder %v1222, 1000
      %vm1255 = vcmp.lt.s32.totalorder %v1223, 1000
      %vm1256 = vcmp.lt.s32.totalorder %v1224, 1000
      %vm1257 = vcmp.lt.s32.totalorder %v1225, 1000
      %vm1258 = vcmp.lt.s32.totalorder %v1226, 1000
      %vm1259 = vcmp.lt.s32.totalorder %v1227, 1000
      %vm1260 = vcmp.lt.s32.totalorder %v1228, 1000
      %vm1261 = vcmp.lt.s32.totalorder %v1229, 1000
      %vm1262 = vcmp.lt.s32.totalorder %v1230, 1000
      %vm1263 = vcmp.lt.s32.totalorder %v1231, 1000
      %vm1264 = vcmp.lt.s32.totalorder %v1232, 1000
      %vm1265 = vcmp.lt.s32.totalorder %v1233, 1000
      %vm1266 = vcmp.lt.s32.totalorder %v1234, 1000
      %vm1267 = vcmp.lt.s32.totalorder %v1235, 1000
      %vm1268 = vcmp.lt.s32.totalorder %v1236, 1000
      %vm1269 = vcmp.lt.s32.totalorder %v1237, 1000
      %vm1270 = vcmp.lt.s32.totalorder %v1238, 1000
      %vm1271 = vcmp.lt.s32.totalorder %v1239, 1000
      %vm1272 = vcmp.lt.s32.totalorder %v1240, 1000
      %vm1273 = vcmp.lt.s32.totalorder %v1241, 1000
      %vm1274 = vcmp.lt.s32.totalorder %v1242, 1000
      %vm1275 = vcmp.lt.s32.totalorder %v1243, 1000
      %vm1276 = vcmp.lt.s32.totalorder %v1244, 1000
      %vm1277 = vcmp.lt.s32.totalorder %v1245, 1000
      %vm1278 = vcmp.lt.s32.totalorder %v1246, 1000
      %vm1279 = vcmp.lt.s32.totalorder %v1247, 1000
      %vm1280 = vcmp.lt.s32.totalorder %v1248, 1000
      %v1281 = vsel %vm1249, %v1150, 0.0
      %v1282 = vsel %vm1250, %v1151, 0.0
      %v1283 = vsel %vm1251, %v1152, 0.0
      %v1284 = vsel %vm1252, %v1153, 0.0
      %v1285 = vsel %vm1253, %v1154, 0.0
      %v1286 = vsel %vm1254, %v1155, 0.0
      %v1287 = vsel %vm1255, %v1156, 0.0
      %v1288 = vsel %vm1256, %v1157, 0.0
      %v1289 = vsel %vm1257, %v1158, 0.0
      %v1290 = vsel %vm1258, %v1159, 0.0
      %v1291 = vsel %vm1259, %v1160, 0.0
      %v1292 = vsel %vm1260, %v1161, 0.0
      %v1293 = vsel %vm1261, %v1162, 0.0
      %v1294 = vsel %vm1262, %v1163, 0.0
      %v1295 = vsel %vm1263, %v1164, 0.0
      %v1296 = vsel %vm1264, %v1165, 0.0
      %v1297 = vsel %vm1265, %v1166, 0.0
      %v1298 = vsel %vm1266, %v1167, 0.0
      %v1299 = vsel %vm1267, %v1168, 0.0
      %v1300 = vsel %vm1268, %v1169, 0.0
      %v1301 = vsel %vm1269, %v1170, 0.0
      %v1302 = vsel %vm1270, %v1171, 0.0
      %v1303 = vsel %vm1271, %v1172, 0.0
      %v1304 = vsel %vm1272, %v1173, 0.0
      %v1305 = vsel %vm1273, %v1174, 0.0
      %v1306 = vsel %vm1274, %v1175, 0.0
      %v1307 = vsel %vm1275, %v1176, 0.0
      %v1308 = vsel %vm1276, %v1177, 0.0
      %v1309 = vsel %vm1277, %v1178, 0.0
      %v1310 = vsel %vm1278, %v1179, 0.0
      %v1311 = vsel %vm1279, %v1180, 0.0
      %v1312 = vsel %vm1280, %v1181, 0.0
      %vm1313 = vcmask 7168
      %v1314 = vsel %vm1313, %v1281, 0.0
      %v1315 = vsel %vm1313, %v1282, 0.0
      %v1316 = vadd.f32 %v1314, %v1315
      %v1317 = vsel %vm1313, %v1283, 0.0
      %v1318 = vadd.f32 %v1316, %v1317
      %v1319 = vsel %vm1313, %v1284, 0.0
      %v1320 = vadd.f32 %v1318, %v1319
      %v1321 = vsel %vm1313, %v1285, 0.0
      %v1322 = vadd.f32 %v1320, %v1321
      %v1323 = vsel %vm1313, %v1286, 0.0
      %v1324 = vadd.f32 %v1322, %v1323
      %v1325 = vsel %vm1313, %v1287, 0.0
      %v1326 = vadd.f32 %v1324, %v1325
      %v1327 = vsel %vm1313, %v1288, 0.0
      %v1328 = vadd.f32 %v1326, %v1327
      %v1329 = vsel %vm1313, %v1289, 0.0
      %v1330 = vadd.f32 %v1328, %v1329
      %v1331 = vsel %vm1313, %v1290, 0.0
      %v1332 = vadd.f32 %v1330, %v1331
      %v1333 = vsel %vm1313, %v1291, 0.0
      %v1334 = vadd.f32 %v1332, %v1333
      %v1335 = vsel %vm1313, %v1292, 0.0
      %v1336 = vadd.f32 %v1334, %v1335
      %v1337 = vsel %vm1313, %v1293, 0.0
      %v1338 = vadd.f32 %v1336, %v1337
      %v1339 = vsel %vm1313, %v1294, 0.0
      %v1340 = vadd.f32 %v1338, %v1339
      %v1341 = vsel %vm1313, %v1295, 0.0
      %v1342 = vadd.f32 %v1340, %v1341
      %v1343 = vsel %vm1313, %v1296, 0.0
      %v1344 = vadd.f32 %v1342, %v1343
      %v1345 = vsel %vm1313, %v1297, 0.0
      %v1346 = vadd.f32 %v1344, %v1345
      %v1347 = vsel %vm1313, %v1298, 0.0
      %v1348 = vadd.f32 %v1346, %v1347
      %v1349 = vsel %vm1313, %v1299, 0.0
      %v1350 = vadd.f32 %v1348, %v1349
      %v1351 = vsel %vm1313, %v1300, 0.0
      %v1352 = vadd.f32 %v1350, %v1351
      %v1353 = vsel %vm1313, %v1301, 0.0
      %v1354 = vadd.f32 %v1352, %v1353
      %v1355 = vsel %vm1313, %v1302, 0.0
      %v1356 = vadd.f32 %v1354, %v1355
      %v1357 = vsel %vm1313, %v1303, 0.0
      %v1358 = vadd.f32 %v1356, %v1357
      %v1359 = vsel %vm1313, %v1304, 0.0
      %v1360 = vadd.f32 %v1358, %v1359
      %v1361 = vsel %vm1313, %v1305, 0.0
      %v1362 = vadd.f32 %v1360, %v1361
      %v1363 = vsel %vm1313, %v1306, 0.0
      %v1364 = vadd.f32 %v1362, %v1363
      %v1365 = vsel %vm1313, %v1307, 0.0
      %v1366 = vadd.f32 %v1364, %v1365
      %v1367 = vsel %vm1313, %v1308, 0.0
      %v1368 = vadd.f32 %v1366, %v1367
      %v1369 = vsel %vm1313, %v1309, 0.0
      %v1370 = vadd.f32 %v1368, %v1369
      %v1371 = vsel %vm1313, %v1310, 0.0
      %v1372 = vadd.f32 %v1370, %v1371
      %v1373 = vsel %vm1313, %v1311, 0.0
      %v1374 = vadd.f32 %v1372, %v1373
      %v1375 = vsel %vm1313, %v1312, 0.0
      %v1376 = vadd.f32 %v1374, %v1375
      %1377 = vadd.xlane.f32.xlu0 %v1376
      %v1378 = vpop.xlane.xlu0 %1377
      %v1379 = vrot.slane %v1378, 4
      %v1380 = vadd.f32 %v1378, %v1379
      %v1381 = vrot.slane %v1380, 2
      %v1382 = vadd.f32 %v1380, %v1381
      %v1383 = vrot.slane %v1382, 1
      %v1384 = vadd.f32 %v1382, %v1383
      %s1385 = vtos %v1384
      %v1386 = vstv %s1385
      %1387 = vst [vmem:[%s209] sm:$0xff] %v1386
      %p1388 = scmp.lt.s32.totalorder %s14, 3
      %s1389 = scalar_select %p1388, %s14, 3
      %s1390 = smul.addr %s1389, 8
      %s1391 = scalar_lea.vmem %s3, %s1390
      // Predicated region
      $region33: #{focal_loss.1} parent=31 // pred_check
        %p1392 = pneg %p105
      $region34: #{focal_loss.1} parent=31 // pred_check_branch
        %1394 = sbr.rel (%p1392) target = $region36
      $region35: #{focal_loss.1} parent=31 // pred_region
        _
      $region36: #{focal_loss.1} parent=31 // pred_fallthru
        _
    $region32: #{focal_loss.1} parent=5 // pred_fallthru
      _
    %p1395 = scmp.le.s32.totalorder 2, %s9
    // Predicated region
    $region37: #{focal_loss.1} parent=5 // pred_check
      %p1396 = pneg %p1395
    $region38: #{focal_loss.1} parent=5 // pred_check_branch
      %1398 = sbr.rel (%p1396) target = $region40
    $region39: #{focal_loss.1} parent=5 // pred_region
      %s1399 = ssub.s32 %s9, 2
      // Predicated region
      $region41: #{focal_loss.1} parent=39 // pred_check
        %p1400 = pneg %p111
      $region42: #{focal_loss.1} parent=39 // pred_check_branch
        %1402 = sbr.rel (%p1400) target = $region44
      $region43: #{focal_loss.1} parent=39 // pred_region
        %p1403 = scmp.lt.s32.totalorder %s15, 3
        %s1404 = scalar_select %p1403, %s15, 3
        %s1405 = smul.addr %s1404, 8
        %s1406 = scalar_lea.vmem %s3, %s1405
      $region44: #{focal_loss.1} parent=39 // pred_fallthru
        _
    $region40: #{focal_loss.1} parent=5 // pred_fallthru
      _
  $region6: #{focal_loss.1} parent=0 // loop_footer
    %s13 = sadd.s32 1, %s9
  $region7: #{focal_loss.1} parent=0 // loop_footer_branch
    %8 = sbr.rel target = $region3
  $region8: #{focal_loss.1} parent=0 // loop_exit
    _

</llo_original>
